<compile_context>
chip_gen: v5e
topology: v5e:2x2
jax: 0.10.0
libtpu: 0.0.40
codegen_flags: <defaults>
</compile_context>

<pallas_src>
import functools
import math

import jax
import jax.numpy as jnp
from jax import lax
from jax import image as jimage
from jax.scipy import ndimage as jndimage
from jax.experimental import pallas as pl
from jax.experimental.pallas import tpu as pltpu


# ----------------------------------------------------------------------------
# pltpu.roll convention probe (run once, outside jit; result is cached).
# ----------------------------------------------------------------------------
def _roll_probe_kernel(x_ref, o_ref):
    o_ref[...] = pltpu.roll(x_ref[...], 1, axis=1)


@functools.lru_cache(maxsize=1)
def _roll_matches_numpy():
    """True iff pltpu.roll(x, s, axis) == jnp.roll(x, s, axis) on this backend.

    Must be primed once outside any jit trace (done in __main__ / first eager
    deepg_forward call); afterwards the cached bool is reused under jit.
    """
    x = jnp.arange(8 * 128, dtype=jnp.float32).reshape(8, 128)
    out = pl.pallas_call(
        _roll_probe_kernel,
        out_shape=jax.ShapeDtypeStruct((8, 128), jnp.float32),
    )(x)
    return bool(jnp.array_equal(out, jnp.roll(x, 1, axis=1)))


def _shift_cols(a, s, m, roll_like_np):
    """Return b with b[:, r] = a[:, (r + s) % m]  (columns shifted left by s)."""
    amt = ((-s) if roll_like_np else s) % m
    if amt == 0:
        return a
    return pltpu.roll(a, amt, axis=1)


# ----------------------------------------------------------------------------
# Fused DeepG kernel: 9 conv(+ReLU) layers in one pallas_call.
# ----------------------------------------------------------------------------
def _deepg_fused_kernel(*refs, H, W, NB, cfg, compute_dtype, roll_like_np):
    """refs = x_cols, (w0, b0, w1, b1, ..., w8, b8), out.

    x_cols : (K0*K0*C0, M) im2col of the input stack, M = NB*H*W columns,
             column index = n*H*W + h*W + w (lane-dense).
    w0     : (C1, K0*K0*C0)      layer 0 as a single deep MXU matmul.
    wi     : (K*K, Cout, Cin)    per-tap packed weights, layers 1..8.
    bi     : (Cout, 1)           biases (f32).
    out    : (Cout_last, M)      lane-dense output slab.

    Activations are (C, M) values (channels on sublanes, flat spatial on
    lanes).  Conv taps = pltpu.roll of the resident slab + per-column boundary
    mask; no padded buffers, no zero fills, no unaligned interior writes.
    """
    n_layers = len(cfg)
    x_ref = refs[0]
    w_refs = refs[1:1 + 2 * n_layers:2]
    b_refs = refs[2:2 + 2 * n_layers:2]
    o_ref = refs[1 + 2 * n_layers]

    HW = H * W
    M = NB * HW

    # Per-column (h, w) coordinates, computed once and shared by all tap masks.
    col = lax.broadcasted_iota(jnp.int32, (1, M), 1)
    hw = col % HW
    h_idx = hw // W
    w_idx = hw % W
    mask_cache = {}

    def tap_mask(dh, dw):
        key = (dh, dw)
        if key not in mask_cache:
            mask_cache[key] = ((h_idx >= -dh) & (h_idx < H - dh) &
                               (w_idx >= -dw) & (w_idx < W - dw))
        return mask_cache[key]

    # ---- layer 0: ONE deep matmul (Cout, K0*K0*C0) x (K0*K0*C0, M) ----------
    _, _, _, _, relu0 = cfg[0]
    acc = jnp.dot(w_refs[0][...], x_ref[...],
                  preferred_element_type=jnp.float32)
    acc = acc + b_refs[0][...]
    if relu0:
        acc = jnp.maximum(acc, 0.0)
    a = acc                                   # (C1, M) f32

    # ---- layers 1..8: per-tap roll (XLU) + mask (VPU) + matmul (MXU) --------
    for li in range(1, n_layers):
        K, P, Ci, Co, relu = cfg[li]
        w_ref = w_refs[li]
        acc = jnp.zeros((Co, M), jnp.float32)
        for kh in range(K):
            for kw in range(K):
                dh, dw = kh - P, kw - P
                shifted = _shift_cols(a, dh * W + dw, M, roll_like_np)
                if dh == 0 and dw == 0:
                    masked = shifted
                else:
                    masked = jnp.where(tap_mask(dh, dw), shifted, 0.0)
                if compute_dtype != jnp.float32:
                    masked = masked.astype(compute_dtype)
                # acc += dot(...) chain stays contiguous (MRB-friendly on v7x).
                acc = acc + jnp.dot(w_ref[kh * K + kw], masked,
                                    preferred_element_type=jnp.float32)
        acc = acc + b_refs[li][...]
        if relu:
            acc = jnp.maximum(acc, 0.0)
        a = acc

    # Lane-dense final store: (Cout_last, M), unmasked wide vst.
    o_ref[...] = a.astype(o_ref.dtype)


def _im2col_cols(x_nhwc, K, pad, dtype):
    """(N,H,W,C) -> (K*K*C, N*H*W) patch matrix, column index n*H*W + h*W + w."""
    N, H, W, C = x_nhwc.shape
    xp = jnp.pad(x_nhwc, ((0, 0), (pad, pad), (pad, pad), (0, 0)))
    taps = [xp[:, kh:kh + H, kw:kw + W, :]            # (N, H, W, C)
            for kh in range(K) for kw in range(K)]
    pat = jnp.stack(taps, axis=3)                     # (N, H, W, K*K, C)
    pat = pat.reshape(N * H * W, K * K * C)
    return jnp.transpose(pat).astype(dtype)           # (K*K*C, N*H*W)


def deepg_forward(x_nchw, params, compute_dtype=jnp.float32):
    """DeepG.forward: NCHW input -> NHWC output, all 9 convs in one pallas_call."""
    N, C0, H, W = x_nchw.shape
    assert H == W, "DeepG pyramid levels are square"
    HW = H * W
    roll_like_np = _roll_matches_numpy()

    # Grid split: 2 parallel programs (feeds both v7x TensorCores) only when
    # each program keeps a lane-dense (multiple-of-128) column count; otherwise
    # a single program that folds every image's rows into the matmul columns
    # (row batching for the single-TC v5e/v6e case).
    G = 2 if (N % 2 == 0 and ((N // 2) * HW) % 128 == 0) else 1
    NB = N // G
    M = NB * HW

    x_nhwc = jnp.transpose(x_nchw, (0, 2, 3, 1)).astype(jnp.float32)

    cfg = []
    flat_inputs = []
    in_specs = []

    # Layer 0: im2col built in the wrapper -> single deep MXU matmul in-kernel.
    w0, b0, p0, relu0 = params[0]
    K0, _, Ci0, Co0 = w0.shape
    assert Ci0 == C0
    cfg.append((int(K0), int(p0), int(Ci0), int(Co0), bool(relu0)))
    x_cols = _im2col_cols(x_nhwc, int(K0), int(p0), compute_dtype)
    flat_inputs.append(x_cols)                                      # (K0*K0*C0, N*HW)
    in_specs.append(pl.BlockSpec((K0 * K0 * C0, M), lambda g: (0, g)))
    flat_inputs.append(jnp.transpose(w0.reshape(K0 * K0 * C0, Co0))
                       .astype(compute_dtype))                      # (Co0, K0*K0*C0)
    in_specs.append(pl.BlockSpec((Co0, K0 * K0 * C0), lambda g: (0, 0)))
    flat_inputs.append(b0.reshape(Co0, 1).astype(jnp.float32))
    in_specs.append(pl.BlockSpec((Co0, 1), lambda g: (0, 0)))

    # Layers 1..8: weights prepacked per tap as (K*K, Cout, Cin); constant
    # index_map, so Pallas fetches them once and keeps them VMEM-resident.
    for (w, b, pad, relu) in params[1:]:
        K, K2, Ci, Co = w.shape
        assert K == K2
        cfg.append((int(K), int(pad), int(Ci), int(Co), bool(relu)))
        wp = jnp.transpose(w.reshape(K * K, Ci, Co), (0, 2, 1)).astype(compute_dtype)
        flat_inputs.append(wp)
        in_specs.append(pl.BlockSpec((K * K, Co, Ci), lambda g: (0, 0, 0)))
        flat_inputs.append(b.reshape(Co, 1).astype(jnp.float32))
        in_specs.append(pl.BlockSpec((Co, 1), lambda g: (0, 0)))

    Co_last = cfg[-1][3]
    kernel = functools.partial(_deepg_fused_kernel, H=H, W=W, NB=NB,
                               cfg=tuple(cfg), compute_dtype=compute_dtype,
                               roll_like_np=roll_like_np)

    out_flat = pl.pallas_call(
        kernel,
        out_shape=jax.ShapeDtypeStruct((Co_last, N * HW), jnp.float32),
        grid=(G,),
        in_specs=in_specs,
        out_specs=pl.BlockSpec((Co_last, M), lambda g: (0, g)),
        compiler_params=pltpu.CompilerParams(
            dimension_semantics=("parallel",)),
    )(*flat_inputs)

    # Lane-dense (Co_last, N*H*W) slab -> NHWC (the .permute(0,2,3,1) PyTorch returns).
    out = jnp.transpose(out_flat.reshape(Co_last, N, H, W), (1, 2, 3, 0))
    return out.astype(x_nchw.dtype)


# ----------------------------------------------------------------------------
# Parameters (DeepG.__init__ shapes / init semantics) and a lax.conv reference.
# ----------------------------------------------------------------------------
def _init_conv(key, kh, kw, cin_per_group, cout):
    # PyTorch Conv2d default init U(+-1/sqrt(fan_in)); DeepG.initc multiplies the
    # weight by sqrt(6).  Bias: U(+-1/sqrt(fan_in)).
    fan_in = cin_per_group * kh * kw
    kw_key, kb_key = jax.random.split(key)
    w = jax.random.uniform(kw_key, (kh, kw, cin_per_group, cout), jnp.float32,
                           -1.0, 1.0) * (math.sqrt(6.0) / math.sqrt(fan_in))
    b = jax.random.uniform(kb_key, (cout,), jnp.float32, -1.0, 1.0) / math.sqrt(fan_in)
    return w, b


def make_deepg_params(key, infm=2):
    """Synthetic parameters matching DeepG.__init__ (HWIO weights)."""
    assert infm == 2
    keys = jax.random.split(key, 9)
    params = []
    # conv1: Conv2d(2, 32, 7, padding=3, groups=2) expressed as a dense conv with
    # a block-diagonal HWIO weight (in ch 0 -> out 0..15, in ch 1 -> out 16..31).
    wg, b1 = _init_conv(keys[0], 7, 7, infm // 2, 32)            # (7,7,1,32)
    w1 = jnp.zeros((7, 7, infm, 32), jnp.float32)
    w1 = w1.at[:, :, 0, 0:16].set(wg[:, :, 0, 0:16])
    w1 = w1.at[:, :, 1, 16:32].set(wg[:, :, 0, 16:32])
    params.append((w1, b1, 3, True))
    layer_specs = [
        (32, 32, 7, 3, True),    # conv2a
        (32, 32, 7, 3, True),    # conv2b
        (32, 64, 7, 3, True),    # conv3a
        (64, 64, 5, 2, True),    # conv3b
        (64, 64, 5, 2, True),    # conv4a
        (64, 32, 5, 2, True),    # conv4b
        (32, 16, 3, 1, True),    # conv5a
        (16, 2, 3, 1, False),    # conv5b (no ReLU after the last conv)
    ]
    for i, (ci, co, k, p, relu) in enumerate(layer_specs):
        w, b = _init_conv(keys[i + 1], k, k, ci, co)
        params.append((w, b, p, relu))
    return params


def deepg_reference(x_nchw, params):
    x = jnp.transpose(x_nchw, (0, 2, 3, 1))
    for w, b, pad, relu in params:
        x = jax.lax.conv_general_dilated(
            x, w, (1, 1), [(pad, pad), (pad, pad)],
            dimension_numbers=('NHWC', 'HWIO', 'NHWC')) + b
        if relu:
            x = jnp.maximum(x, 0.0)
    return x


# ----------------------------------------------------------------------------
# Pyramid glue (JAX): AvgPool2d(2,2), 2x bilinear upsample, grid_sample, identity.
# ----------------------------------------------------------------------------
def avg_pool2(x_nchw):
    N, C, H, W = x_nchw.shape
    return x_nchw.reshape(N, C, H // 2, 2, W // 2, 2).mean(axis=(3, 5))


def upsample2_bilinear(x_nchw):
    N, C, H, W = x_nchw.shape
    return jimage.resize(x_nchw, (N, C, 2 * H, 2 * W), method='bilinear')


def identity_grid(dim):
    gx = jnp.linspace(-1.0, 1.0, dim)
    gy = jnp.linspace(-1.0, 1.0, dim)
    X, Y = jnp.meshgrid(gx, gy)                       # 'xy' indexing, as np
    I = jnp.stack([X, Y], axis=0)[None]               # (1, 2, dim, dim)
    return jnp.transpose(I, (0, 2, 3, 1))             # (1, dim, dim, 2) = (x, y)


def grid_sample_bilinear(img_nchw, grid):
    """F.grid_sample(bilinear, zeros padding, legacy align_corners=True)."""
    N, C, H, W = img_nchw.shape

    def sample_one(img, g):                            # img: (C,H,W), g: (Hg,Wg,2)
        px = (g[..., 0] + 1.0) * 0.5 * (W - 1)
        py = (g[..., 1] + 1.0) * 0.5 * (H - 1)
        chans = [jndimage.map_coordinates(img[c], [py, px], 1,
                                          mode='constant', cval=0.0)
                 for c in range(C)]
        return jnp.stack(chans, axis=0)                # (C, Hg, Wg)

    return jax.vmap(sample_one)(img_nchw, grid)


def pyramid_forward(stack, level_params, ident, size, skip, idx=0):
    """Pyramid.forward: coarse-to-fine field estimation with DeepG at each level."""
    N = stack.shape[0]
    if idx == size:
        base = jnp.broadcast_to(ident, (N,) + ident.shape[1:])
        return base, [base]
    field, residuals = pyramid_forward(avg_pool2(stack), level_params, ident,
                                       size, skip, idx + 1)
    field = jnp.transpose(
        upsample2_bilinear(jnp.transpose(field, (0, 3, 1, 2))), (0, 2, 3, 1))
    if idx < skip:
        Hs = stack.shape[2]
        residuals.insert(0, jnp.zeros((N, Hs, Hs, 2), stack.dtype))
        return field, residuals
    resampled = grid_sample_bilinear(stack[:, 0:1], field)
    new_stack = jnp.concatenate([resampled, stack[:, 1:]], axis=1)
    residual = deepg_forward(new_stack, level_params[idx])   # fused Pallas kernel
    residuals.insert(0, residual)
    return residual + field, residuals


# ----------------------------------------------------------------------------
# Demo / self-check
# ----------------------------------------------------------------------------
if __name__ == "__main__":
    key = jax.random.PRNGKey(0)
    pkey, xkey = jax.random.split(key)

    SIZE, SKIP, DIM, N, INFM = 2, 0, 16, 2, 2
    level_keys = jax.random.split(pkey, SIZE)
    level_params = [make_deepg_params(k, infm=INFM) for k in level_keys]

    x = jax.random.normal(xkey, (N, INFM, DIM, DIM), jnp.float32)

    # Prime the pltpu.roll convention probe outside of any jit trace.
    _ = _roll_matches_numpy()

    # Correctness of the fused DeepG kernel vs an XLA conv reference
    # (both pyramid resolutions), f32 path.
    out16 = jax.block_until_ready(deepg_forward(x, level_params[0]))
    ref16 = jax.block_until_ready(deepg_reference(x, level_params[0]))
    assert out16.shape == (N, DIM, DIM, 2), out16.shape
    err16 = float(jnp.max(jnp.abs(out16 - ref16)))
    assert jnp.allclose(out16, ref16, atol=2e-2, rtol=2e-2), err16

    x8 = avg_pool2(x)
    out8 = jax.block_until_ready(deepg_forward(x8, level_params[1]))
    ref8 = jax.block_until_ready(deepg_reference(x8, level_params[1]))
    err8 = float(jnp.max(jnp.abs(out8 - ref8)))
    assert jnp.allclose(out8, ref8, atol=2e-2, rtol=2e-2), err8

    # bf16 MXU-operand fast path (v6e/v7x feedback): f32 accumulation keeps the
    # 9-layer chain close to the f32 reference; loose tolerance check.
    out16_bf = jax.block_until_ready(
        deepg_forward(x, level_params[0], compute_dtype=jnp.bfloat16))
    err_bf = float(jnp.max(jnp.abs(out16_bf - ref16)))
    assert bool(jnp.all(jnp.isfinite(out16_bf)))
    assert jnp.allclose(out16_bf, ref16, atol=1e-1, rtol=1e-1), err_bf

    # Full Pyramid forward (size=2, skip=0): coarse identity grid, upsample,
    # grid_sample the source channel, DeepG residual per level.
    ident = identity_grid(DIM // (2 ** SIZE))
    run = jax.jit(lambda s: pyramid_forward(s, level_params, ident, SIZE, SKIP))
    field, residuals = run(x)
    field = jax.block_until_ready(field)
    assert field.shape == (N, DIM, DIM, 2), field.shape
    assert len(residuals) == SIZE + 1
    assert bool(jnp.all(jnp.isfinite(field)))

    print("KERNEL_OK")
</pallas_src>

<mosaic_0001>
module attributes {stable_mosaic.version = 11 : i64} {
  func.func @_roll_probe_kernel(%arg0: memref<8x128xf32, #tpu.memory_space<vmem>>, %arg1: memref<8x128xf32, #tpu.memory_space<vmem>>) attributes {dimension_semantics = [], scalar_prefetch = 0 : i64, scratch_operands = 0 : i64, tpu.core_type = #tpu.core_type<tc>} {
    %c0 = arith.constant 0 : index
    %c0_0 = arith.constant 0 : index
    %0 = vector.load %arg0[%c0, %c0_0] : memref<8x128xf32, #tpu.memory_space<vmem>>, vector<8x128xf32>
    %c1_i32 = arith.constant 1 : i32
    %1 = tpu.dynamic_rotate %0 by %c1_i32 dim 1 : vector<8x128xf32>, i32 -> vector<8x128xf32>
    %c0_1 = arith.constant 0 : index
    %c0_2 = arith.constant 0 : index
    %2 = vector.load %arg1[%c0_1, %c0_2] : memref<8x128xf32, #tpu.memory_space<vmem>>, vector<8x128xf32>
    tpu.vector_store %arg1[%c0_1, %c0_2], %1 {strides = array<i32>} : memref<8x128xf32, #tpu.memory_space<vmem>>, vector<8x128xf32>,
    return
  }
}

</mosaic_0001>

<llo_original>
// kernel: tpu_custom_call.1
$region0: #{tpu_custom_call.1}
  #allocation0 [shape = 'u32[]', space=smem, size = 0x4, offset = 0x4, fixed_abs, tag = 'smem constant byte address 0x4 - core index']
  #allocation1 [shape = 'u32[72,128]{1,0:T(1,128)}', space=vmem, size = 0x9000, scoped, tag = 'internal scratch']
  %s0 = inlined_call_operand.hbm [shape: f32[8,128], index: 0, kind: input, shape index: {}]
  %s1 = inlined_call_operand.hbm [shape: f32[8,128], index: 1, kind: output, shape index: {}]
  %s2 = sld [smem:[#allocation0]]
  $region18: #{tpu_custom_call.1} parent=0
    _
  %s4 = ssub.s32 1, %s2
  %s5 = scalar_select 0, %s4, %s2
  $region1: #{tpu_custom_call.1} parent=0
    #allocation2 [shape = 'u8[4096]{0}', space=vmem, size = 0x1000, scoped, tag = 'input window, operand 0, single buffered']
    #allocation3 [shape = 's32[1]{0}', space=sflag, size = 0x4, scoped, tag = 'scoped memory for tpu_custom_call.1']
    #allocation4 [shape = 's32[1]{0}', space=sflag, size = 0x4, scoped, tag = 'scoped memory for tpu_custom_call.1']
    #allocation5 [shape = 'u8[4096]{0}', space=vmem, size = 0x1000, scoped, tag = 'output window, operand 0, single buffered']
    %6 = vsyncpa [#allocation3], 0
    %7 = vsyncpa [#allocation4], 0
    // Predicated region
    $region2: #{tpu_custom_call.1} parent=1 // pred_check
      _
    $region3: #{tpu_custom_call.1} parent=1 // pred_check_branch
      %9 = sbr.rel (0) target = $region5
    $region4: #{tpu_custom_call.1} parent=1 // pred_region
      %11 = vsyncadd [#allocation3], 0
      %s13 = sshll.u32 %s0, 4
      %s14 = int_to_ptr.hbm [resolvable:$true] %s13
      %s15 = sshll.u32 [#allocation2], 4
      %s16 = int_to_ptr.vmem [resolvable:$true] %s15
      %18 = dma.hbm_to_vmem [thread:$0]  %s14, 128, %s16, [#allocation3]
    $region5: #{tpu_custom_call.1} parent=1 // pred_fallthru
      _
    // Predicated region
    $region6: #{tpu_custom_call.1} parent=1 // pred_check
      _
    $region7: #{tpu_custom_call.1} parent=1 // pred_check_branch
      %20 = sbr.rel (0) target = $region9
    $region8: #{tpu_custom_call.1} parent=1 // pred_region
      %22 = dma.done [#allocation3], 128
    $region9: #{tpu_custom_call.1} parent=1 // pred_fallthru
      _
    %v23 = vld [vmem:[#allocation2] sm:$0xff]
    %24 = vrot.lane.b32.xlu0 %v23, 1
    %v25 = vpop.permute.xlu0 %24
    %26 = vst [vmem:[#allocation5] sm:$0xff] %v25
    // Predicated region
    $region10: #{tpu_custom_call.1} parent=1 // pred_check
      _
    $region11: #{tpu_custom_call.1} parent=1 // pred_check_branch
      %28 = sbr.rel (0) target = $region13
    $region12: #{tpu_custom_call.1} parent=1 // pred_region
      %30 = vsyncadd [#allocation4], 0
      %s32 = sshll.u32 [#allocation5], 4
      %s33 = int_to_ptr.vmem [resolvable:$true] %s32
      %s34 = sshll.u32 %s1, 4
      %s35 = int_to_ptr.hbm [resolvable:$true] %s34
      %37 = dma.vmem_to_hbm [thread:$0]  %s33, 128, %s35, [#allocation4]
    $region13: #{tpu_custom_call.1} parent=1 // pred_fallthru
      _
    // Predicated region
    $region14: #{tpu_custom_call.1} parent=1 // pred_check
      _
    $region15: #{tpu_custom_call.1} parent=1 // pred_check_branch
      %39 = sbr.rel (0) target = $region17
    $region16: #{tpu_custom_call.1} parent=1 // pred_region
      %41 = dma.done [#allocation4], 128
    $region17: #{tpu_custom_call.1} parent=1 // pred_fallthru
      _
    %42 = vsyncpa [#allocation3], 1
    %43 = vsyncpa [#allocation4], 1

</llo_original>
